<compile_context>
chip_gen: v5e
topology: v5e:2x2
jax: 0.10.0
libtpu: 0.0.40
codegen_flags: <defaults>
</compile_context>

<pallas_src>
import math

import jax
import jax.numpy as jnp
from jax.experimental import pallas as pl
from jax.experimental.pallas import tpu as pltpu

# ----------------------------- configuration --------------------------------
NUM_INTENTIONS = 3
OBS_DIM = 10
ACTION_DIM = 6
INPUT_DIM = OBS_DIM + ACTION_DIM            # 16 (multiple of 8 -> sublane-clean)
SHARED_SIZES = (32, 32)                     # shared trunk hidden sizes
INTENTION_SIZES = (32,)                     # per-intention MLP hidden sizes
BATCH = 8

H0 = SHARED_SIZES[0]
H1 = SHARED_SIZES[1]
NIH = NUM_INTENTIONS * INTENTION_SIZES[0]   # fused intention hidden width (96)
OUT_PAD = 8                                 # heads padded to 8 output sublanes

LANE = 128                                  # lane width (batch tile granularity)
MAX_TILE_B = 2048                           # batch tile cap (sweep 1024-2048)


def _round_up(x, m):
    return ((x + m - 1) // m) * m


# ----------------------------- parameter init -------------------------------
def xavier_uniform(key, fan_in, fan_out, gain):
    """Matches torch.nn.init.xavier_uniform_ (returned as [in, out])."""
    bound = gain * math.sqrt(6.0 / (fan_in + fan_out))
    return jax.random.uniform(
        key, (fan_in, fan_out), minval=-bound, maxval=bound, dtype=jnp.float32
    )


def init_params(key):
    gain_relu = math.sqrt(2.0)   # torch.nn.init.calculate_gain('relu')
    gain_linear = 1.0            # torch.nn.init.calculate_gain('linear')

    keys = jax.random.split(key, 2 + 2 * NUM_INTENTIONS)

    # shared trunk (relu), biases zero
    w_s0 = xavier_uniform(keys[0], INPUT_DIM, H0, gain_relu)
    b_s0 = jnp.zeros((1, H0), jnp.float32)
    w_s1 = xavier_uniform(keys[1], H0, H1, gain_relu)
    b_s1 = jnp.zeros((1, H1), jnp.float32)

    # per-intention MLP: one relu hidden layer + linear output of size 1
    w_i0, b_i0, w_io, b_io = [], [], [], []
    for i in range(NUM_INTENTIONS):
        w_i0.append(xavier_uniform(keys[2 + 2 * i], H1, INTENTION_SIZES[0], gain_relu))
        b_i0.append(jnp.zeros((1, INTENTION_SIZES[0]), jnp.float32))
        w_io.append(xavier_uniform(keys[3 + 2 * i], INTENTION_SIZES[0], 1, gain_linear))
        b_io.append(jnp.zeros((1, 1), jnp.float32))

    return dict(
        w_s0=w_s0, b_s0=b_s0, w_s1=w_s1, b_s1=b_s1,
        w_i0=jnp.stack(w_i0), b_i0=jnp.stack(b_i0),      # [N, H1, IH], [N, 1, IH]
        w_io=jnp.stack(w_io), b_io=jnp.stack(b_io),      # [N, IH, 1],  [N, 1, 1]
    )


def pack_params(params):
    """Pre-pack weights for the transposed (batch-on-lanes) fused kernel."""
    n, ih = NUM_INTENTIONS, INTENTION_SIZES[0]

    # torch-native [out, in] orientation so the kernel computes W @ x
    w0 = params["w_s0"].T                                           # [H0, IN]
    w1 = params["w_s1"].T                                           # [H1, H0]
    wh1 = jnp.concatenate([params["w_i0"][i].T for i in range(n)], axis=0)  # [N*IH, H1]

    # fused output layer: row i holds head i's weights over its IH slice,
    # rows >= N are exact zeros -> output sublanes >= N are exact zeros.
    wh2 = jnp.zeros((OUT_PAD, n * ih), jnp.float32)
    for i in range(n):
        wh2 = wh2.at[i, i * ih:(i + 1) * ih].set(params["w_io"][i, :, 0])

    # single packed bias column: [H0 + H1 + N*IH + OUT_PAD, 1]
    b0 = params["b_s0"].T
    b1 = params["b_s1"].T
    bh1 = jnp.concatenate([params["b_i0"][i].T for i in range(n)], axis=0)
    bh2 = jnp.zeros((OUT_PAD, 1), jnp.float32)
    bh2 = bh2.at[:n, 0].set(params["b_io"][:, 0, 0])
    bias = jnp.concatenate([b0, b1, bh1, bh2], axis=0)              # [168, 1]

    return dict(w0=w0, w1=w1, wh1=wh1, wh2=wh2, bias=bias)


# ------------------------------- Pallas kernel -------------------------------
def multi_q_kernel(x_ref, w0_ref, w1_ref, wh1_ref, wh2_ref, bias_ref, out_ref):
    # Batch lives on the lane axis; features/heads live on sublanes.
    # Bias column [F, 1] broadcasts across lanes (batch).
    b0 = bias_ref[0:H0, :]
    b1 = bias_ref[H0:H0 + H1, :]
    bh1 = bias_ref[H0 + H1:H0 + H1 + NIH, :]
    bh2 = bias_ref[H0 + H1 + NIH:H0 + H1 + NIH + OUT_PAD, :]

    x = x_ref[...]                                                   # [16, TB]
    h = jnp.maximum(
        jnp.dot(w0_ref[...], x, preferred_element_type=jnp.float32) + b0, 0.0)   # [32, TB]
    h = jnp.maximum(
        jnp.dot(w1_ref[...], h, preferred_element_type=jnp.float32) + b1, 0.0)   # [32, TB]
    hh = jnp.maximum(
        jnp.dot(wh1_ref[...], h, preferred_element_type=jnp.float32) + bh1, 0.0)  # [96, TB]
    out_ref[...] = (
        jnp.dot(wh2_ref[...], hh, preferred_element_type=jnp.float32) + bh2)      # [8, TB]


def multi_q_forward(packed, observation, action):
    """Pallas-backed MultiQNet forward.

    observation: [B, OBS_DIM], action: [B, ACTION_DIM]
    returns: [B, NUM_INTENTIONS, 1]  (matches torch cat(values, dim=-2))
    """
    # TODO(synk): the optional `intention=` single-head selection of the torch
    # forward is not implemented; the kernel always evaluates all heads.
    observation = observation.astype(jnp.float32)
    action = action.astype(jnp.float32)
    batch = observation.shape[0]

    # One fused, transposed input stream: [16, B] (features on sublanes,
    # batch on lanes).  The concat+transpose is a cheap wrapper-side XLA op.
    x_t = jnp.concatenate([observation, action], axis=-1).T          # [16, B]

    # Batch tiling on the lane axis: pad to a multiple of 128; when the batch
    # spans more than one lane tile, ensure >=2 grid steps (v7x dual-TC) and
    # cap tiles at MAX_TILE_B.
    padded_b = _round_up(batch, LANE)
    if padded_b <= LANE:
        tile_b = LANE
    else:
        tile_b = min(MAX_TILE_B, _round_up((padded_b + 1) // 2, LANE))
    padded_b = _round_up(padded_b, tile_b)
    if padded_b != batch:
        x_t = jnp.pad(x_t, ((0, 0), (0, padded_b - batch)))

    grid = (padded_b // tile_b,)

    def resident_spec(arr):
        # full-array block, constant index -> loaded once, resident across steps
        return pl.BlockSpec(arr.shape, lambda b: (0, 0))

    weight_order = ("w0", "w1", "wh1", "wh2", "bias")
    weights = [packed[k] for k in weight_order]

    out = pl.pallas_call(
        multi_q_kernel,
        out_shape=jax.ShapeDtypeStruct((OUT_PAD, padded_b), jnp.float32),
        grid_spec=pltpu.PrefetchScalarGridSpec(
            num_scalar_prefetch=0,
            grid=grid,
            in_specs=[pl.BlockSpec((INPUT_DIM, tile_b), lambda b: (0, b))]
                     + [resident_spec(w) for w in weights],
            out_specs=pl.BlockSpec((OUT_PAD, tile_b), lambda b: (0, b)),
        ),
        compiler_params=pltpu.CompilerParams(
            dimension_semantics=("parallel",)),
    )(x_t, *weights)

    # [OUT_PAD, padded_b] -> [B, N] -> [B, N, 1]
    return out[:NUM_INTENTIONS, :batch].T[:, :, None]


# ------------------------------ reference (JAX) -------------------------------
def multi_q_reference(params, observation, action):
    x = jnp.concatenate([observation, action], axis=-1).astype(jnp.float32)
    h = jnp.maximum(x @ params["w_s0"] + params["b_s0"], 0.0)
    h = jnp.maximum(h @ params["w_s1"] + params["b_s1"], 0.0)
    vals = []
    for i in range(NUM_INTENTIONS):
        hi = jnp.maximum(h @ params["w_i0"][i] + params["b_i0"][i], 0.0)
        vals.append(hi @ params["w_io"][i] + params["b_io"][i])
    return jnp.stack(vals, axis=-2)  # [B, N, 1]


# ----------------------------------- main ------------------------------------
if __name__ == "__main__":
    key = jax.random.PRNGKey(0)
    k_params, k_obs, k_act = jax.random.split(key, 3)

    params = init_params(k_params)
    packed = pack_params(params)
    observation = jax.random.normal(k_obs, (BATCH, OBS_DIM), dtype=jnp.float32)
    action = jax.random.normal(k_act, (BATCH, ACTION_DIM), dtype=jnp.float32)

    out = multi_q_forward(packed, observation, action)
    out = jax.block_until_ready(out)

    ref = multi_q_reference(params, observation, action)
    assert out.shape == (BATCH, NUM_INTENTIONS, 1), out.shape
    assert jnp.allclose(out, ref, atol=1e-5, rtol=1e-5), "mismatch vs reference"

    print("KERNEL_OK")
</pallas_src>

<mosaic_0001>
module attributes {stable_mosaic.version = 11 : i64} {
  func.func @multi_q_kernel(%arg0: i32, %arg1: memref<16x128xf32, #tpu.memory_space<vmem>>, %arg2: memref<32x16xf32, #tpu.memory_space<vmem>>, %arg3: memref<32x32xf32, #tpu.memory_space<vmem>>, %arg4: memref<96x32xf32, #tpu.memory_space<vmem>>, %arg5: memref<8x96xf32, #tpu.memory_space<vmem>>, %arg6: memref<168x1xf32, #tpu.memory_space<vmem>>, %arg7: memref<8x128xf32, #tpu.memory_space<vmem>>) attributes {dimension_semantics = [#tpu.dimension_semantics<parallel>], iteration_bounds = array<i64: 1>, scalar_prefetch = 0 : i64, scratch_operands = 0 : i64, tpu.core_type = #tpu.core_type<tc>, window_params = [{transform_indices = @transform_0, window_bounds = array<i64: 16, 128>}, {pipeline_mode = #tpu.pipeline_mode<synchronous>, transform_indices = @transform_1, window_bounds = array<i64: 32, 16>}, {pipeline_mode = #tpu.pipeline_mode<synchronous>, transform_indices = @transform_2, window_bounds = array<i64: 32, 32>}, {pipeline_mode = #tpu.pipeline_mode<synchronous>, transform_indices = @transform_3, window_bounds = array<i64: 96, 32>}, {pipeline_mode = #tpu.pipeline_mode<synchronous>, transform_indices = @transform_4, window_bounds = array<i64: 8, 96>}, {pipeline_mode = #tpu.pipeline_mode<synchronous>, transform_indices = @transform_5, window_bounds = array<i64: 168, 1>}, {transform_indices = @transform_6, window_bounds = array<i64: 8, 128>}]} {
    %c0 = arith.constant 0 : index
    %c0_0 = arith.constant 0 : index
    %0 = vector.load %arg6[%c0, %c0_0] : memref<168x1xf32, #tpu.memory_space<vmem>>, vector<32x1xf32>
    %c32 = arith.constant 32 : index
    %c0_1 = arith.constant 0 : index
    %1 = vector.load %arg6[%c32, %c0_1] : memref<168x1xf32, #tpu.memory_space<vmem>>, vector<32x1xf32>
    %c64 = arith.constant 64 : index
    %c0_2 = arith.constant 0 : index
    %2 = vector.load %arg6[%c64, %c0_2] : memref<168x1xf32, #tpu.memory_space<vmem>>, vector<96x1xf32>
    %c160 = arith.constant 160 : index
    %c0_3 = arith.constant 0 : index
    %3 = vector.load %arg6[%c160, %c0_3] : memref<168x1xf32, #tpu.memory_space<vmem>>, vector<8x1xf32>
    %c0_4 = arith.constant 0 : index
    %c0_5 = arith.constant 0 : index
    %4 = vector.load %arg1[%c0_4, %c0_5] : memref<16x128xf32, #tpu.memory_space<vmem>>, vector<16x128xf32>
    %c0_6 = arith.constant 0 : index
    %c0_7 = arith.constant 0 : index
    %5 = vector.load %arg2[%c0_6, %c0_7] : memref<32x16xf32, #tpu.memory_space<vmem>>, vector<32x16xf32>
    %cst = arith.constant dense<0.000000e+00> : vector<32x128xf32>
    %6 = tpu.matmul %5, %4, %cst {dimension_numbers = #tpu.dot_dimension_numbers<[1], [0], [0], [1], [0, 0, 1, 1], [], []>} : vector<32x16xf32>, vector<16x128xf32>, vector<32x128xf32> -> vector<32x128xf32>
    %7 = vector.broadcast %0 : vector<32x1xf32> to vector<32x128xf32>
    %8 = arith.addf %6, %7 : vector<32x128xf32>
    %cst_8 = arith.constant 0.000000e+00 : f32
    %9 = vector.broadcast %cst_8 : f32 to vector<32x128xf32>
    %10 = arith.maximumf %8, %9 : vector<32x128xf32>
    %c0_9 = arith.constant 0 : index
    %c0_10 = arith.constant 0 : index
    %11 = vector.load %arg3[%c0_9, %c0_10] : memref<32x32xf32, #tpu.memory_space<vmem>>, vector<32x32xf32>
    %cst_11 = arith.constant dense<0.000000e+00> : vector<32x128xf32>
    %12 = tpu.matmul %11, %10, %cst_11 {dimension_numbers = #tpu.dot_dimension_numbers<[1], [0], [0], [1], [0, 0, 1, 1], [], []>} : vector<32x32xf32>, vector<32x128xf32>, vector<32x128xf32> -> vector<32x128xf32>
    %13 = vector.broadcast %1 : vector<32x1xf32> to vector<32x128xf32>
    %14 = arith.addf %12, %13 : vector<32x128xf32>
    %cst_12 = arith.constant 0.000000e+00 : f32
    %15 = vector.broadcast %cst_12 : f32 to vector<32x128xf32>
    %16 = arith.maximumf %14, %15 : vector<32x128xf32>
    %c0_13 = arith.constant 0 : index
    %c0_14 = arith.constant 0 : index
    %17 = vector.load %arg4[%c0_13, %c0_14] : memref<96x32xf32, #tpu.memory_space<vmem>>, vector<96x32xf32>
    %cst_15 = arith.constant dense<0.000000e+00> : vector<96x128xf32>
    %18 = tpu.matmul %17, %16, %cst_15 {dimension_numbers = #tpu.dot_dimension_numbers<[1], [0], [0], [1], [0, 0, 1, 1], [], []>} : vector<96x32xf32>, vector<32x128xf32>, vector<96x128xf32> -> vector<96x128xf32>
    %19 = vector.broadcast %2 : vector<96x1xf32> to vector<96x128xf32>
    %20 = arith.addf %18, %19 : vector<96x128xf32>
    %cst_16 = arith.constant 0.000000e+00 : f32
    %21 = vector.broadcast %cst_16 : f32 to vector<96x128xf32>
    %22 = arith.maximumf %20, %21 : vector<96x128xf32>
    %c0_17 = arith.constant 0 : index
    %c0_18 = arith.constant 0 : index
    %23 = vector.load %arg5[%c0_17, %c0_18] : memref<8x96xf32, #tpu.memory_space<vmem>>, vector<8x96xf32>
    %cst_19 = arith.constant dense<0.000000e+00> : vector<8x128xf32>
    %24 = tpu.matmul %23, %22, %cst_19 {dimension_numbers = #tpu.dot_dimension_numbers<[1], [0], [0], [1], [0, 0, 1, 1], [], []>} : vector<8x96xf32>, vector<96x128xf32>, vector<8x128xf32> -> vector<8x128xf32>
    %25 = vector.broadcast %3 : vector<8x1xf32> to vector<8x128xf32>
    %26 = arith.addf %24, %25 : vector<8x128xf32>
    %c0_20 = arith.constant 0 : index
    %c0_21 = arith.constant 0 : index
    %27 = vector.load %arg7[%c0_20, %c0_21] : memref<8x128xf32, #tpu.memory_space<vmem>>, vector<8x128xf32>
    tpu.vector_store %arg7[%c0_20, %c0_21], %26 {strides = array<i32>} : memref<8x128xf32, #tpu.memory_space<vmem>>, vector<8x128xf32>,
    return
  }
  func.func @transform_0(%arg0: i32) -> (i32, i32) {
    %c0_i32 = arith.constant 0 : i32
    %c0_i32_0 = arith.constant 0 : i32
    return %c0_i32, %arg0 : i32, i32
  }
  func.func @transform_1(%arg0: i32) -> (i32, i32) {
    %c0_i32 = arith.constant 0 : i32
    %c0_i32_0 = arith.constant 0 : i32
    %c0_i32_1 = arith.constant 0 : i32
    return %c0_i32, %c0_i32_0 : i32, i32
  }
  func.func @transform_2(%arg0: i32) -> (i32, i32) {
    %c0_i32 = arith.constant 0 : i32
    %c0_i32_0 = arith.constant 0 : i32
    %c0_i32_1 = arith.constant 0 : i32
    return %c0_i32, %c0_i32_0 : i32, i32
  }
  func.func @transform_3(%arg0: i32) -> (i32, i32) {
    %c0_i32 = arith.constant 0 : i32
    %c0_i32_0 = arith.constant 0 : i32
    %c0_i32_1 = arith.constant 0 : i32
    return %c0_i32, %c0_i32_0 : i32, i32
  }
  func.func @transform_4(%arg0: i32) -> (i32, i32) {
    %c0_i32 = arith.constant 0 : i32
    %c0_i32_0 = arith.constant 0 : i32
    %c0_i32_1 = arith.constant 0 : i32
    return %c0_i32, %c0_i32_0 : i32, i32
  }
  func.func @transform_5(%arg0: i32) -> (i32, i32) {
    %c0_i32 = arith.constant 0 : i32
    %c0_i32_0 = arith.constant 0 : i32
    %c0_i32_1 = arith.constant 0 : i32
    return %c0_i32, %c0_i32_0 : i32, i32
  }
  func.func @transform_6(%arg0: i32) -> (i32, i32) {
    %c0_i32 = arith.constant 0 : i32
    %c0_i32_0 = arith.constant 0 : i32
    return %c0_i32, %arg0 : i32, i32
  }
}

</mosaic_0001>

<llo_original>
// kernel: tpu_custom_call.1
$region0: #{tpu_custom_call.1}
  #allocation0 [shape = 'u32[]', space=smem, size = 0x4, offset = 0x4, fixed_abs, tag = 'smem constant byte address 0x4 - core index']
  #allocation1 [shape = 'u32[72,128]{1,0:T(1,128)}', space=vmem, size = 0x9000, scoped, tag = 'internal scratch']
  %s0 = inlined_call_operand.vmem [shape: f32[16,128], index: 0, kind: input, shape index: {}]
  %s1 = inlined_call_operand.vmem [shape: f32[32,16], index: 1, kind: input, shape index: {}]
  %s2 = inlined_call_operand.vmem [shape: f32[32,32], index: 2, kind: input, shape index: {}]
  %s3 = inlined_call_operand.vmem [shape: f32[96,32], index: 3, kind: input, shape index: {}]
  %s4 = inlined_call_operand.vmem [shape: f32[8,96], index: 4, kind: input, shape index: {}]
  %s5 = inlined_call_operand.vmem [shape: f32[168,1], index: 5, kind: input, shape index: {}]
  %s6 = inlined_call_operand.hbm [shape: f32[8,128], index: 6, kind: output, shape index: {}]
  %s7 = sld [smem:[#allocation0]]
  $region34: #{tpu_custom_call.1} parent=0
    _
  %s9 = ssub.s32 1, %s7
  %s10 = scalar_select 0, %s9, %s7
  $region1: #{tpu_custom_call.1} parent=0
    #allocation2 [shape = 'u8[4096]{0}', space=vmem, size = 0x1000, scoped, tag = 'output window, operand 0, single buffered']
    #allocation3 [shape = 's32[1]{0}', space=sflag, size = 0x4, scoped, tag = 'scoped memory for tpu_custom_call.1']
    %11 = vsyncpa [#allocation3], 0
    // Predicated region
    $region2: #{tpu_custom_call.1} parent=1 // pred_check
      _
    $region3: #{tpu_custom_call.1} parent=1 // pred_check_branch
      %13 = sbr.rel (0) target = $region5
    $region4: #{tpu_custom_call.1} parent=1 // pred_region
      _
    $region5: #{tpu_custom_call.1} parent=1 // pred_fallthru
      _
    // Predicated region
    $region6: #{tpu_custom_call.1} parent=1 // pred_check
      _
    $region7: #{tpu_custom_call.1} parent=1 // pred_check_branch
      %15 = sbr.rel (0) target = $region9
    $region8: #{tpu_custom_call.1} parent=1 // pred_region
      _
    $region9: #{tpu_custom_call.1} parent=1 // pred_fallthru
      _
    // Predicated region
    $region10: #{tpu_custom_call.1} parent=1 // pred_check
      _
    $region11: #{tpu_custom_call.1} parent=1 // pred_check_branch
      %17 = sbr.rel (0) target = $region13
    $region12: #{tpu_custom_call.1} parent=1 // pred_region
      _
    $region13: #{tpu_custom_call.1} parent=1 // pred_fallthru
      _
    // Predicated region
    $region14: #{tpu_custom_call.1} parent=1 // pred_check
      _
    $region15: #{tpu_custom_call.1} parent=1 // pred_check_branch
      %19 = sbr.rel (0) target = $region17
    $region16: #{tpu_custom_call.1} parent=1 // pred_region
      _
    $region17: #{tpu_custom_call.1} parent=1 // pred_fallthru
      _
    // Predicated region
    $region18: #{tpu_custom_call.1} parent=1 // pred_check
      _
    $region19: #{tpu_custom_call.1} parent=1 // pred_check_branch
      %21 = sbr.rel (0) target = $region21
    $region20: #{tpu_custom_call.1} parent=1 // pred_region
      _
    $region21: #{tpu_custom_call.1} parent=1 // pred_fallthru
      _
    // Predicated region
    $region22: #{tpu_custom_call.1} parent=1 // pred_check
      _
    $region23: #{tpu_custom_call.1} parent=1 // pred_check_branch
      %23 = sbr.rel (0) target = $region25
    $region24: #{tpu_custom_call.1} parent=1 // pred_region
      _
    $region25: #{tpu_custom_call.1} parent=1 // pred_fallthru
      _
    %v24 = vld [vmem:[%s5] sm:$0xff]
    %v25 = vld [vmem:[%s5 + $0x8] sm:$0xff]
    %v26 = vld [vmem:[%s5 + $0x10] sm:$0xff]
    %v27 = vld [vmem:[%s5 + $0x18] sm:$0xff]
    %v28 = vld [vmem:[%s5 + $0x20] sm:$0xff]
    %v29 = vld [vmem:[%s5 + $0x28] sm:$0xff]
    %v30 = vld [vmem:[%s5 + $0x30] sm:$0xff]
    %v31 = vld [vmem:[%s5 + $0x38] sm:$0xff]
    %v32 = vld [vmem:[%s5 + $0x40] sm:$0xff]
    %v33 = vld [vmem:[%s5 + $0x48] sm:$0xff]
    %v34 = vld [vmem:[%s5 + $0x50] sm:$0xff]
    %v35 = vld [vmem:[%s5 + $0x58] sm:$0xff]
    %v36 = vld [vmem:[%s5 + $0x60] sm:$0xff]
    %v37 = vld [vmem:[%s5 + $0x68] sm:$0xff]
    %v38 = vld [vmem:[%s5 + $0x70] sm:$0xff]
    %v39 = vld [vmem:[%s5 + $0x78] sm:$0xff]
    %v40 = vld [vmem:[%s5 + $0x80] sm:$0xff]
    %v41 = vld [vmem:[%s5 + $0x88] sm:$0xff]
    %v42 = vld [vmem:[%s5 + $0x90] sm:$0xff]
    %v43 = vld [vmem:[%s5 + $0x98] sm:$0xff]
    %v44 = vld [vmem:[%s5 + $0xa0] sm:$0xff]
    %v45 = vld [vmem:[%s0] sm:$0xff]
    %v46 = vld [vmem:[%s0 + $0x8] sm:$0xff]
    %v47 = vld [vmem:[%s1] sm:$0xff]
    %v48 = vld [vmem:[%s1 + $0x8] sm:$0xff]
    %v49 = vld [vmem:[%s1 + $0x10] sm:$0xff]
    %v50 = vld [vmem:[%s1 + $0x18] sm:$0xff]
    %52 = vset.pattern.permute.xlu0 0
    %53 = vperm.xlu0 %52, %v24
    %v54 = vpop.permute.xlu0 %53
    %57 = vset.pattern.permute.xlu0 0
    %58 = vperm.xlu0 %57, %v25
    %v59 = vpop.permute.xlu0 %58
    %62 = vset.pattern.permute.xlu0 0
    %63 = vperm.xlu0 %62, %v26
    %v64 = vpop.permute.xlu0 %63
    %67 = vset.pattern.permute.xlu0 0
    %68 = vperm.xlu0 %67, %v27
    %v69 = vpop.permute.xlu0 %68
    %vm71 = vcmask 130048
    %v73 = vsel %vm71, %v47, 0
    %v76 = vsel %vm71, %v48, 0
    %v79 = vsel %vm71, %v49, 0
    %v82 = vsel %vm71, %v50, 0
    %84 = vmatpush.msra.mxu0 0.0
    %85 = vmatpush.msra.mxu0 0.0
    %86 = vmatpush.msra.mxu0 0.0
    %87 = vmatpush.msra.mxu0 0.0
    %88 = vmatpush.msra.mxu0 0.0
    %89 = vmatpush.msra.mxu0 0.0
    %90 = vmatpush.msra.mxu0 0.0
    %91 = vmatpush.msra.mxu0 0.0
    %92 = vmatpush.msra.mxu0 0.0
    %93 = vmatpush.msra.mxu0 0.0
    %94 = vmatpush.msra.mxu0 0.0
    %95 = vmatpush.msra.mxu0 0.0
    %96 = vmatpush.msra.mxu0 0.0
    %97 = vmatpush.msra.mxu0 0.0
    %98 = vmatpush.msra.mxu0 %v46
    %99 = vmatpush.msra.mxu0 %v45
    %100 = vmatmul.f32.gmra.mxu0 %v73
    %v101 = vpop.f32.mrf.mxu0
    %v102 = vadd.f32 %v54, %v101
    %103 = vmatmul.f32.gmra.mxu0 %v76
    %v104 = vpop.f32.mrf.mxu0
    %v105 = vadd.f32 %v59, %v104
    %106 = vmatmul.f32.gmra.mxu0 %v79
    %v107 = vpop.f32.mrf.mxu0
    %v108 = vadd.f32 %v64, %v107
    %109 = vmatmul.f32.gmra.mxu0 %v82
    %v110 = vpop.f32.mrf.mxu0
    %v111 = vadd.f32 %v69, %v110
    %112 = vdwg.mxu0
    %v113 = vmax.f32 %v102, 0.0
    %v114 = vmax.f32 %v105, 0.0
    %v115 = vmax.f32 %v108, 0.0
    %v116 = vmax.f32 %v111, 0.0
    %v117 = vld [vmem:[%s2] sm:$0xff]
    %v118 = vld [vmem:[%s2 + $0x8] sm:$0xff]
    %v119 = vld [vmem:[%s2 + $0x10] sm:$0xff]
    %v120 = vld [vmem:[%s2 + $0x18] sm:$0xff]
    %122 = vset.pattern.permute.xlu0 0
    %123 = vperm.xlu0 %122, %v28
    %v124 = vpop.permute.xlu0 %123
    %127 = vset.pattern.permute.xlu0 0
    %128 = vperm.xlu0 %127, %v29
    %v129 = vpop.permute.xlu0 %128
    %132 = vset.pattern.permute.xlu0 0
    %133 = vperm.xlu0 %132, %v30
    %v134 = vpop.permute.xlu0 %133
    %137 = vset.pattern.permute.xlu0 0
    %138 = vperm.xlu0 %137, %v31
    %v139 = vpop.permute.xlu0 %138
    %vm141 = vcmask 261120
    %v143 = vsel %vm141, %v117, 0
    %v146 = vsel %vm141, %v118, 0
    %v149 = vsel %vm141, %v119, 0
    %v152 = vsel %vm141, %v120, 0
    %154 = vmatpush.msra.mxu0 0.0
    %155 = vmatpush.msra.mxu0 0.0
    %156 = vmatpush.msra.mxu0 0.0
    %157 = vmatpush.msra.mxu0 0.0
    %158 = vmatpush.msra.mxu0 0.0
    %159 = vmatpush.msra.mxu0 0.0
    %160 = vmatpush.msra.mxu0 0.0
    %161 = vmatpush.msra.mxu0 0.0
    %162 = vmatpush.msra.mxu0 0.0
    %163 = vmatpush.msra.mxu0 0.0
    %164 = vmatpush.msra.mxu0 0.0
    %165 = vmatpush.msra.mxu0 0.0
    %166 = vmatpush.msra.mxu0 %v116
    %167 = vmatpush.msra.mxu0 %v115
    %168 = vmatpush.msra.mxu0 %v114
    %169 = vmatpush.msra.mxu0 %v113
    %170 = vmatmul.f32.gmra.mxu0 %v143
    %v171 = vpop.f32.mrf.mxu0
    %v172 = vadd.f32 %v124, %v171
    %173 = vmatmul.f32.gmra.mxu0 %v146
    %v174 = vpop.f32.mrf.mxu0
    %v175 = vadd.f32 %v129, %v174
    %176 = vmatmul.f32.gmra.mxu0 %v149
    %v177 = vpop.f32.mrf.mxu0
    %v178 = vadd.f32 %v134, %v177
    %179 = vmatmul.f32.gmra.mxu0 %v152
    %v180 = vpop.f32.mrf.mxu0
    %v181 = vadd.f32 %v139, %v180
    %182 = vdwg.mxu0
    %v183 = vmax.f32 %v172, 0.0
    %v184 = vmax.f32 %v175, 0.0
    %v185 = vmax.f32 %v178, 0.0
    %v186 = vmax.f32 %v181, 0.0
    %v187 = vld [vmem:[%s3] sm:$0xff]
    %v188 = vld [vmem:[%s3 + $0x8] sm:$0xff]
    %v189 = vld [vmem:[%s3 + $0x10] sm:$0xff]
    %v190 = vld [vmem:[%s3 + $0x18] sm:$0xff]
    %v191 = vld [vmem:[%s3 + $0x20] sm:$0xff]
    %v192 = vld [vmem:[%s3 + $0x28] sm:$0xff]
    %v193 = vld [vmem:[%s3 + $0x30] sm:$0xff]
    %v194 = vld [vmem:[%s3 + $0x38] sm:$0xff]
    %v195 = vld [vmem:[%s3 + $0x40] sm:$0xff]
    %v196 = vld [vmem:[%s3 + $0x48] sm:$0xff]
    %v197 = vld [vmem:[%s3 + $0x50] sm:$0xff]
    %v198 = vld [vmem:[%s3 + $0x58] sm:$0xff]
    %200 = vset.pattern.permute.xlu0 0
    %201 = vperm.xlu0 %200, %v32
    %v202 = vpop.permute.xlu0 %201
    %205 = vset.pattern.permute.xlu0 0
    %206 = vperm.xlu0 %205, %v33
    %v207 = vpop.permute.xlu0 %206
    %210 = vset.pattern.permute.xlu0 0
    %211 = vperm.xlu0 %210, %v34
    %v212 = vpop.permute.xlu0 %211
    %215 = vset.pattern.permute.xlu0 0
    %216 = vperm.xlu0 %215, %v35
    %v217 = vpop.permute.xlu0 %216
    %220 = vset.pattern.permute.xlu0 0
    %221 = vperm.xlu0 %220, %v36
    %v222 = vpop.permute.xlu0 %221
    %225 = vset.pattern.permute.xlu0 0
    %226 = vperm.xlu0 %225, %v37
    %v227 = vpop.permute.xlu0 %226
    %230 = vset.pattern.permute.xlu0 0
    %231 = vperm.xlu0 %230, %v38
    %v232 = vpop.permute.xlu0 %231
    %235 = vset.pattern.permute.xlu0 0
    %236 = vperm.xlu0 %235, %v39
    %v237 = vpop.permute.xlu0 %236
    %240 = vset.pattern.permute.xlu0 0
    %241 = vperm.xlu0 %240, %v40
    %v242 = vpop.permute.xlu0 %241
    %245 = vset.pattern.permute.xlu0 0
    %246 = vperm.xlu0 %245, %v41
    %v247 = vpop.permute.xlu0 %246
    %250 = vset.pattern.permute.xlu0 0
    %251 = vperm.xlu0 %250, %v42
    %v252 = vpop.permute.xlu0 %251
    %255 = vset.pattern.permute.xlu0 0
    %256 = vperm.xlu0 %255, %v43
    %v257 = vpop.permute.xlu0 %256
    %v260 = vsel %vm141, %v187, 0
    %v263 = vsel %vm141, %v188, 0
    %v266 = vsel %vm141, %v189, 0
    %v269 = vsel %vm141, %v190, 0
    %v272 = vsel %vm141, %v191, 0
    %v275 = vsel %vm141, %v192, 0
    %v278 = vsel %vm141, %v193, 0
    %v281 = vsel %vm141, %v194, 0
    %v284 = vsel %vm141, %v195, 0
    %v287 = vsel %vm141, %v196, 0
    %v290 = vsel %vm141, %v197, 0
    %v293 = vsel %vm141, %v198, 0
    %295 = vmatpush.msra.mxu0 0.0
    %296 = vmatpush.msra.mxu0 0.0
    %297 = vmatpush.msra.mxu0 0.0
    %298 = vmatpush.msra.mxu0 0.0
    %299 = vmatpush.msra.mxu0 0.0
    %300 = vmatpush.msra.mxu0 0.0
    %301 = vmatpush.msra.mxu0 0.0
    %302 = vmatpush.msra.mxu0 0.0
    %303 = vmatpush.msra.mxu0 0.0
    %304 = vmatpush.msra.mxu0 0.0
    %305 = vmatpush.msra.mxu0 0.0
    %306 = vmatpush.msra.mxu0 0.0
    %307 = vmatpush.msra.mxu0 %v186
    %308 = vmatpush.msra.mxu0 %v185
    %309 = vmatpush.msra.mxu0 %v184
    %310 = vmatpush.msra.mxu0 %v183
    %311 = vmatmul.f32.gmra.mxu0 %v260
    %v312 = vpop.f32.mrf.mxu0
    %v313 = vadd.f32 %v202, %v312
    %314 = vmatmul.f32.gmra.mxu0 %v263
    %v315 = vpop.f32.mrf.mxu0
    %v316 = vadd.f32 %v207, %v315
    %317 = vmatmul.f32.gmra.mxu0 %v266
    %v318 = vpop.f32.mrf.mxu0
    %v319 = vadd.f32 %v212, %v318
    %320 = vmatmul.f32.gmra.mxu0 %v269
    %v321 = vpop.f32.mrf.mxu0
    %v322 = vadd.f32 %v217, %v321
    %323 = vmatmul.f32.gmra.mxu0 %v272
    %v324 = vpop.f32.mrf.mxu0
    %v325 = vadd.f32 %v222, %v324
    %326 = vmatmul.f32.gmra.mxu0 %v275
    %v327 = vpop.f32.mrf.mxu0
    %v328 = vadd.f32 %v227, %v327
    %329 = vmatmul.f32.gmra.mxu0 %v278
    %v330 = vpop.f32.mrf.mxu0
    %v331 = vadd.f32 %v232, %v330
    %332 = vmatmul.f32.gmra.mxu0 %v281
    %v333 = vpop.f32.mrf.mxu0
    %v334 = vadd.f32 %v237, %v333
    %335 = vmatmul.f32.gmra.mxu0 %v284
    %v336 = vpop.f32.mrf.mxu0
    %v337 = vadd.f32 %v242, %v336
    %338 = vmatmul.f32.gmra.mxu0 %v287
    %v339 = vpop.f32.mrf.mxu0
    %v340 = vadd.f32 %v247, %v339
    %341 = vmatmul.f32.gmra.mxu0 %v290
    %v342 = vpop.f32.mrf.mxu0
    %v343 = vadd.f32 %v252, %v342
    %344 = vmatmul.f32.gmra.mxu0 %v293
    %v345 = vpop.f32.mrf.mxu0
    %v346 = vadd.f32 %v257, %v345
    %347 = vdwg.mxu0
    %v348 = vmax.f32 %v313, 0.0
    %v349 = vmax.f32 %v316, 0.0
    %v350 = vmax.f32 %v319, 0.0
    %v351 = vmax.f32 %v322, 0.0
    %v352 = vmax.f32 %v325, 0.0
    %v353 = vmax.f32 %v328, 0.0
    %v354 = vmax.f32 %v331, 0.0
    %v355 = vmax.f32 %v334, 0.0
    %v356 = vmax.f32 %v337, 0.0
    %v357 = vmax.f32 %v340, 0.0
    %v358 = vmax.f32 %v343, 0.0
    %v359 = vmax.f32 %v346, 0.0
    %v360 = vld [vmem:[%s4] sm:$0xff]
    %362 = vset.pattern.permute.xlu0 0
    %363 = vperm.xlu0 %362, %v44
    %v364 = vpop.permute.xlu0 %363
    %vm366 = vcmask 785408
    %v368 = vsel %vm366, %v360, 0
    %370 = vmatpush.msra.mxu0 0.0
    %371 = vmatpush.msra.mxu0 0.0
    %372 = vmatpush.msra.mxu0 0.0
    %373 = vmatpush.msra.mxu0 0.0
    %374 = vmatpush.msra.mxu0 %v359
    %375 = vmatpush.msra.mxu0 %v358
    %376 = vmatpush.msra.mxu0 %v357
    %377 = vmatpush.msra.mxu0 %v356
    %378 = vmatpush.msra.mxu0 %v355
    %379 = vmatpush.msra.mxu0 %v354
    %380 = vmatpush.msra.mxu0 %v353
    %381 = vmatpush.msra.mxu0 %v352
    %382 = vmatpush.msra.mxu0 %v351
    %383 = vmatpush.msra.mxu0 %v350
    %384 = vmatpush.msra.mxu0 %v349
    %385 = vmatpush.msra.mxu0 %v348
    %386 = vmatmul.f32.gmra.mxu0 %v368
    %v387 = vpop.f32.mrf.mxu0
    %v388 = vadd.f32 %v364, %v387
    %389 = vdwg.mxu0
    %390 = vst [vmem:[#allocation2] sm:$0xff] %v388
    // Predicated region
    $region26: #{tpu_custom_call.1} parent=1 // pred_check
      _
    $region27: #{tpu_custom_call.1} parent=1 // pred_check_branch
      %392 = sbr.rel (0) target = $region29
    $region28: #{tpu_custom_call.1} parent=1 // pred_region
      %394 = vsyncadd [#allocation3], 0
      %s396 = sshll.u32 [#allocation2], 4
      %s397 = int_to_ptr.vmem [resolvable:$true] %s396
      %s398 = sshll.u32 %s6, 4
      %s399 = int_to_ptr.hbm [resolvable:$true] %s398
      %401 = dma.vmem_to_hbm [thread:$0]  %s397, 128, %s399, [#allocation3]
    $region29: #{tpu_custom_call.1} parent=1 // pred_fallthru
      _
    // Predicated region
    $region30: #{tpu_custom_call.1} parent=1 // pred_check
      _
    $region31: #{tpu_custom_call.1} parent=1 // pred_check_branch
      %403 = sbr.rel (0) target = $region33
    $region32: #{tpu_custom_call.1} parent=1 // pred_region
      %405 = dma.done [#allocation3], 128
    $region33: #{tpu_custom_call.1} parent=1 // pred_fallthru
      _
    %406 = vsyncpa [#allocation3], 1

</llo_original>
